<compile_context>
chip_gen: v6e
topology: v6e:2x2x1
jax: 0.10.0
libtpu: 0.0.40
codegen_flags: <defaults>
</compile_context>

<pallas_src>
import math
from functools import partial

import jax
import jax.numpy as jnp
from jax import lax
from jax.experimental import pallas as pl
from jax.experimental.pallas import tpu as pltpu


def _vmem_gather_kernel(ids_ref, table_ref, out_ref, *, scale, tokens_per_block):
    """Gather rows from a VMEM-resident table, then scale.

    ids_ref:   SMEM (n_padded,) int32   scalar-prefetched token ids
    table_ref: VMEM (V, D)              whole table, single-buffered
    out_ref:   VMEM (T, D)              output tile for this grid step
    """
    base = pl.program_id(0) * tokens_per_block

    def copy_row(t, carry):
        tid = ids_ref[base + t]                       # cheap SMEM scalar read
        out_ref[pl.ds(t, 1), :] = table_ref[pl.ds(tid, 1), :]
        return carry

    lax.fori_loop(0, tokens_per_block, copy_row, 0)

    # One dense, full-width pass for the sqrt(d_model) scale (exact in f32).
    out_ref[...] = (out_ref[...].astype(jnp.float32) * scale).astype(out_ref.dtype)


def _hbm_gather_kernel(ids_ref, table_hbm, out_ref, row_sem, *, scale, tokens_per_block):
    """Row gather straight from HBM when the table does not fit in VMEM.

    ids_ref:   SMEM (n_padded,) int32
    table_hbm: HBM (V, D)  (memory_space=pl.ANY)
    out_ref:   VMEM (T, D)
    row_sem:   DMA semaphore shared by the per-row copies
    """
    base = pl.program_id(0) * tokens_per_block

    def issue(t, carry):
        tid = ids_ref[base + t]
        pltpu.make_async_copy(
            table_hbm.at[pl.ds(tid, 1), :],
            out_ref.at[pl.ds(t, 1), :],
            row_sem,
        ).start()
        return carry

    lax.fori_loop(0, tokens_per_block, issue, 0)

    def drain(t, carry):
        # All row copies have identical size; each wait retires one of them.
        pltpu.make_async_copy(
            table_hbm.at[pl.ds(0, 1), :],
            out_ref.at[pl.ds(0, 1), :],
            row_sem,
        ).wait()
        return carry

    lax.fori_loop(0, tokens_per_block, drain, 0)

    out_ref[...] = (out_ref[...].astype(jnp.float32) * scale).astype(out_ref.dtype)
    # TODO(synk): window the row DMAs (issue/wait in chunks) if this fallback
    # becomes the hot path.


def _sublane_multiple(dtype):
    itemsize = jnp.dtype(dtype).itemsize
    return max(8, 32 // max(1, itemsize))           # f32->8, bf16->16, int8->32


def _choose_tokens_per_block(n_tokens, d_model, dtype, block_tokens=None):
    mult = _sublane_multiple(dtype)
    itemsize = jnp.dtype(dtype).itemsize
    if block_tokens is None:
        # Aim for a ~512 KiB lane-dense output tile (amortizes ~0.35 us/step).
        target = (512 * 1024) // max(1, d_model * itemsize)
        block_tokens = max(mult, min(2048, target))
    # Keep >= 2 grid steps so the "parallel" axis can span both v7x cores.
    t = min(block_tokens, pl.cdiv(n_tokens, 2))
    t = max(mult, ((t + mult - 1) // mult) * mult)
    return t


def _vmem_capacity_bytes():
    try:
        return int(pltpu.get_tpu_info().vmem_capacity_bytes)
    except Exception:
        return 64 * 1024 * 1024                     # conservative (v7x per-TC)


def token_embedding(token_ids, emb_table, *, block_tokens=None):
    """token_ids: (B, S) int; emb_table: (V, D) float -> (B, S, D) float."""
    B, S = token_ids.shape
    V, D = emb_table.shape
    scale = math.sqrt(D)
    n_tokens = B * S

    T = _choose_tokens_per_block(n_tokens, D, emb_table.dtype, block_tokens)
    n_padded = pl.cdiv(n_tokens, T) * T
    n_blocks = n_padded // T

    flat_ids = token_ids.reshape(-1).astype(jnp.int32)
    # OOB safety: clamp instead of faulting (PyTorch would raise on bad ids).
    flat_ids = jnp.clip(flat_ids, 0, V - 1)
    flat_ids = jnp.pad(flat_ids, (0, n_padded - n_tokens))  # pad rows gather row 0

    itemsize = jnp.dtype(emb_table.dtype).itemsize
    table_bytes = V * D * itemsize
    out_tile_bytes = T * D * itemsize
    headroom = 4 * 1024 * 1024

    vmem_cap = _vmem_capacity_bytes()
    # Leave ~half of VMEM free (v7x: 64 MiB/TC and both cores hold a copy).
    table_fits = table_bytes + 2 * out_tile_bytes + headroom <= vmem_cap // 2

    if table_fits:
        kernel = partial(_vmem_gather_kernel, scale=scale, tokens_per_block=T)
        table_spec = pl.BlockSpec(memory_space=pltpu.MemorySpace.VMEM)
        scratch_shapes = []
        vmem_need = table_bytes + 2 * out_tile_bytes + headroom
    else:
        kernel = partial(_hbm_gather_kernel, scale=scale, tokens_per_block=T)
        table_spec = pl.BlockSpec(memory_space=pl.ANY)
        scratch_shapes = [pltpu.SemaphoreType.DMA(())]
        vmem_need = 2 * out_tile_bytes + headroom

    vmem_limit = int(min(vmem_cap, max(vmem_need, 4 * 1024 * 1024)))

    out_padded = pl.pallas_call(
        kernel,
        out_shape=jax.ShapeDtypeStruct((n_padded, D), emb_table.dtype),
        grid_spec=pltpu.PrefetchScalarGridSpec(
            num_scalar_prefetch=1,          # flat_ids -> SMEM, cheap scalar reads
            grid=(n_blocks,),
            in_specs=[table_spec],
            out_specs=pl.BlockSpec((T, D), lambda i, ids: (i, 0)),
            scratch_shapes=scratch_shapes,
        ),
        compiler_params=pltpu.CompilerParams(
            dimension_semantics=("parallel",),
            vmem_limit_bytes=vmem_limit,
        ),
    )(flat_ids, emb_table)

    return out_padded[:n_tokens].reshape(B, S, D)


if __name__ == "__main__":
    # Module hyperparameters (small, consistent with the forward pass).
    vocab_size = 64
    d_model = 128
    padding_idx = 0

    batch, seq = 2, 8

    key = jax.random.PRNGKey(0)
    k_emb, k_ids = jax.random.split(key)

    # Deterministic init mimicking nn.Embedding(vocab, d, padding_idx):
    # normal weights with the padding row zeroed.
    emb_table = jax.random.normal(k_emb, (vocab_size, d_model), dtype=jnp.float32)
    emb_table = emb_table.at[padding_idx].set(0.0)

    # Example input token ids (include some padding tokens).
    token_ids = jax.random.randint(k_ids, (batch, seq), 0, vocab_size, dtype=jnp.int32)
    token_ids = token_ids.at[0, 0].set(padding_idx)

    out = jax.block_until_ready(token_embedding(token_ids, emb_table))

    # Reference check against plain JAX gather + scale.
    ref = emb_table[token_ids] * math.sqrt(d_model)
    assert out.shape == (batch, seq, d_model)
    assert jnp.allclose(out, ref, rtol=1e-6, atol=1e-6), "mismatch vs reference"

    print("KERNEL_OK")
</pallas_src>

<mosaic_0001>
module attributes {stable_mosaic.version = 11 : i64} {
  func.func @_vmem_gather_kernel(%arg0: i32, %arg1: memref<16xi32, #tpu.memory_space<smem>>, %arg2: memref<64x128xf32, #tpu.memory_space<vmem>>, %arg3: memref<8x128xf32, #tpu.memory_space<vmem>>) attributes {dimension_semantics = [#tpu.dimension_semantics<parallel>], iteration_bounds = array<i64: 2>, scalar_prefetch = 1 : i64, scratch_operands = 0 : i64, tpu.core_type = #tpu.core_type<tc>, window_params = [{pipeline_mode = #tpu.pipeline_mode<synchronous>, transform_indices = @transform_0, window_bounds = array<i64: 64, 128>}, {transform_indices = @transform_1, window_bounds = array<i64: 8, 128>}]} {
    %c8_i32 = arith.constant 8 : i32
    %0 = arith.muli %arg0, %c8_i32 : i32
    %c0_i32 = arith.constant 0 : i32
    %c8_i32_0 = arith.constant 8 : i32
    %1 = arith.addi %c0_i32, %c8_i32_0 : i32
    %c1_i32 = arith.constant 1 : i32
    scf.for %arg4 = %c0_i32 to %1 step %c1_i32  : i32 {
      %6 = arith.addi %0, %arg4 : i32
      %7 = arith.index_cast %6 : i32 to index
      %8 = memref.load %arg1[%7] : memref<16xi32, #tpu.memory_space<smem>>
      %9 = arith.index_cast %8 : i32 to index
      %c0_5 = arith.constant 0 : index
      %10 = vector.load %arg2[%9, %c0_5] : memref<64x128xf32, #tpu.memory_space<vmem>>, vector<1x128xf32>
      %11 = arith.index_cast %arg4 : i32 to index
      %c0_6 = arith.constant 0 : index
      %12 = vector.load %arg3[%11, %c0_6] : memref<8x128xf32, #tpu.memory_space<vmem>>, vector<1x128xf32>
      tpu.vector_store %arg3[%11, %c0_6], %10 {strides = array<i32>} : memref<8x128xf32, #tpu.memory_space<vmem>>, vector<1x128xf32>,
    }
    %c8_i32_1 = arith.constant 8 : i32
    %c0 = arith.constant 0 : index
    %c0_2 = arith.constant 0 : index
    %2 = vector.load %arg3[%c0, %c0_2] : memref<8x128xf32, #tpu.memory_space<vmem>>, vector<8x128xf32>
    %cst = arith.constant 11.3137083 : f32
    %3 = vector.broadcast %cst : f32 to vector<8x128xf32>
    %4 = arith.mulf %2, %3 : vector<8x128xf32>
    %c0_3 = arith.constant 0 : index
    %c0_4 = arith.constant 0 : index
    %5 = vector.load %arg3[%c0_3, %c0_4] : memref<8x128xf32, #tpu.memory_space<vmem>>, vector<8x128xf32>
    tpu.vector_store %arg3[%c0_3, %c0_4], %4 {strides = array<i32>} : memref<8x128xf32, #tpu.memory_space<vmem>>, vector<8x128xf32>,
    return
  }
  func.func @transform_0(%arg0: i32, %arg1: memref<16xi32, #tpu.memory_space<smem>>) -> (i32, i32) {
    %c0_i32 = arith.constant 0 : i32
    %c0_i32_0 = arith.constant 0 : i32
    %c0_i32_1 = arith.constant 0 : i32
    return %c0_i32, %c0_i32_0 : i32, i32
  }
  func.func @transform_1(%arg0: i32, %arg1: memref<16xi32, #tpu.memory_space<smem>>) -> (i32, i32) {
    %c0_i32 = arith.constant 0 : i32
    %c0_i32_0 = arith.constant 0 : i32
    return %arg0, %c0_i32 : i32, i32
  }
}

</mosaic_0001>

<llo_original>
// kernel: tpu_custom_call.1
$region0: #{tpu_custom_call.1}
  #allocation0 [shape = 'u32[]', space=smem, size = 0x4, offset = 0x4, fixed_abs, tag = 'smem constant byte address 0x4 - core index']
  #allocation1 [shape = 'u32[144,128]{1,0:T(1,128)}', space=vmem, size = 0x12000, scoped, tag = 'internal scratch']
  #allocation2 [shape = 's32[1]{0}', space=sflag, size = 0x4, scoped, tag = 'scoped memory for tpu_custom_call.1']
  #allocation3 [shape = 'u8[512]{0}', space=smem, size = 0x200, scoped, tag = 'prefetched SMEM operand 0']
  %s0 = inlined_call_operand.hbm [shape: s32[16], index: 0, kind: input, shape index: {}]
  %s1 = inlined_call_operand.hbm [shape: f32[64,128], index: 1, kind: input, shape index: {}]
  %s2 = inlined_call_operand.hbm [shape: f32[16,128], index: 2, kind: output, shape index: {}]
  %s3 = sld [smem:[#allocation0]]
  $region48: #{tpu_custom_call.1} parent=0
    _
  %s5 = ssub.s32 1, %s3
  %s6 = scalar_select 0, %s5, %s3
  %8 = dma.hbm_to_smem %s0, 16, [#allocation3], [#allocation2]
  %9 = dma.done [#allocation2], 16
  %10 = sfence
  $region1: #{tpu_custom_call.1} parent=0
    #allocation4 [shape = 'u8[32768]{0}', space=vmem, size = 0x8000, scoped, tag = 'input window, operand 1, single buffered']
    #allocation5 [shape = 's32[2]{0}', space=sflag, size = 0x8, scoped, tag = 'scoped memory for tpu_custom_call.1']
    #allocation6 [shape = 's32[2]{0}', space=sflag, size = 0x8, scoped, tag = 'scoped memory for tpu_custom_call.1']
    #allocation7 [shape = 'u8[8192]{0}', space=vmem, size = 0x2000, scoped, tag = 'output window, operand 0']
    %11 = vsyncpa [#allocation5], 0
    %12 = vsyncpa [#allocation6], 0
    %s13 = scalar_lea.sflag [#allocation6], 1
    %14 = vsyncpa %s13, 0
    loop: start=0, step=1, limit=4
    $region2: #{tpu_custom_call.1} parent=1 // loop_pre_header
      _
    $region3: #{tpu_custom_call.1} parent=1 // loop_header
      %s16 = sphi 0, %s20
      %p17 = scmp.ge.s32.totalorder %s16, 4
      %s24 = sphi 0, %s24
      %s26 = sphi 0, %s24
      %s27 = sphi 0, %s26
      %s41 = sphi 0, %s27
      %s47 = sphi 0, %s49
      %s50 = sphi 0, %s47
      %s51 = sphi 0, %s50
      %s67 = sphi 0, %s51
    $region4: #{tpu_custom_call.1} parent=1 // loop_header_branch
      %19 = sbr.rel (%p17) target = $region8
    $region5: #{tpu_custom_call.1} parent=1 // loop_body
      %s21 = ssub.s32 %s16, 1
      %s22 = ssub.s32 %s16, 2
      %s23 = sadd.s32 %s16, 1
      %s25 = sadd.s32 %s24, 1
      %p28 = scmp.eq.s32.totalorder %s16, 1
      %p29 = scmp.ne.s32.totalorder %s24, %s26
      %p30 = scmp.eq.s32.totalorder %s16, 0
      %p31 = por %p29, %p30
      %p32 = scmp.ne.s32.totalorder %s24, %s26
      %p33 = scmp.eq.s32.totalorder %s21, 1
      %p34 = por %p32, %p33
      %p35 = scmp.ne.s32.totalorder %s26, %s27
      %p36 = scmp.eq.s32.totalorder %s21, 0
      %p37 = por %p35, %p36
      %p38 = scmp.ne.s32.totalorder %s26, %s27
      %p39 = scmp.eq.s32.totalorder %s22, 1
      %p40 = por %p38, %p39
      %p42 = scmp.ne.s32.totalorder %s27, %s41
      %p43 = scmp.eq.s32.totalorder %s22, 0
      %p44 = por %p42, %p43
      %s45 = ssub.s32 %s16, %s23
      %p46 = scmp.eq.s32.totalorder %s45, 0
      %s48 = sadd.s32 %s47, 1
      %s49 = scalar_select %p46, %s47, %s48
      %p52 = pneg %p46
      %p53 = scmp.eq.s32.totalorder %s16, 1
      %p54 = por %p52, %p53
      %p55 = scmp.ne.s32.totalorder %s47, %s50
      %p56 = scmp.eq.s32.totalorder %s16, 0
      %p57 = por %p55, %p56
      %p58 = scmp.ne.s32.totalorder %s47, %s50
      %p59 = scmp.eq.s32.totalorder %s21, 1
      %p60 = por %p58, %p59
      %p61 = scmp.ne.s32.totalorder %s50, %s51
      %p62 = scmp.eq.s32.totalorder %s21, 0
      %p63 = por %p61, %p62
      %p64 = scmp.ne.s32.totalorder %s50, %s51
      %p65 = scmp.eq.s32.totalorder %s22, 1
      %p66 = por %p64, %p65
      %p68 = scmp.ne.s32.totalorder %s51, %s67
      %p69 = scmp.eq.s32.totalorder %s22, 0
      %p70 = por %p68, %p69
      %p71 = scmp.le.s32.totalorder 1, %s16
      %p72 = scmp.lt.s32.totalorder %s16, 3
      %p73 = pnand %p71, %p72
      %p74 = pneg %p73
      // Predicated region
      $region9: #{tpu_custom_call.1} parent=5 // pred_check
        _
      $region10: #{tpu_custom_call.1} parent=5 // pred_check_branch
        %76 = sbr.rel (%p73) target = $region12
      $region11: #{tpu_custom_call.1} parent=5 // pred_region
        %s77 = ssub.s32 %s16, 1
        // Predicated region
        $region13: #{tpu_custom_call.1} parent=11 // pred_check
          %p78 = pneg %p37
        $region14: #{tpu_custom_call.1} parent=11 // pred_check_branch
          %80 = sbr.rel (%p78) target = $region16
        $region15: #{tpu_custom_call.1} parent=11 // pred_region
          %s82 = ssub.s32 1024, 1024
          %83 = vsyncadd [#allocation5], %s82
          %s84 = sshll.u32 [#allocation4], 4
          %s85 = int_to_ptr.vmem [resolvable:$true] %s84
          %90 = dma.hbm_to_vmem [thread:$0]  %s1, 1024, %s85, [#allocation5], 128, 128, 8
        $region16: #{tpu_custom_call.1} parent=11 // pred_fallthru
          _
      $region12: #{tpu_custom_call.1} parent=5 // pred_fallthru
        _
      %p91 = scmp.lt.s32.totalorder %s16, 2
      // Predicated region
      $region17: #{tpu_custom_call.1} parent=5 // pred_check
        %p92 = pneg %p91
      $region18: #{tpu_custom_call.1} parent=5 // pred_check_branch
        %94 = sbr.rel (%p92) target = $region20
      $region19: #{tpu_custom_call.1} parent=5 // pred_region
        _
      $region20: #{tpu_custom_call.1} parent=5 // pred_fallthru
        _
      %p95 = scmp.le.s32.totalorder 1, %s16
      %p96 = scmp.lt.s32.totalorder %s16, 3
      %p97 = pnand %p95, %p96
      %p98 = pneg %p97
      // Predicated region
      $region21: #{tpu_custom_call.1} parent=5 // pred_check
        _
      $region22: #{tpu_custom_call.1} parent=5 // pred_check_branch
        %100 = sbr.rel (%p97) target = $region24
      $region23: #{tpu_custom_call.1} parent=5 // pred_region
        %s101 = ssub.s32 %s16, 1
        // Predicated region
        $region25: #{tpu_custom_call.1} parent=23 // pred_check
          %p102 = pneg %p37
        $region26: #{tpu_custom_call.1} parent=23 // pred_check_branch
          %104 = sbr.rel (%p102) target = $region28
        $region27: #{tpu_custom_call.1} parent=23 // pred_region
          %105 = dma.done [#allocation5], 1024
        $region28: #{tpu_custom_call.1} parent=23 // pred_fallthru
          _
        %p106 = pneg %p37
        %p107 = pneg %p34
        %p108 = pneg %p63
        %p109 = pneg %p60
        %s110 = sand.u32 %s50, 1
        %s111 = scalar_lea.sflag [#allocation6], %s110
        %s112 = sand.u32 %s50, 1
        %s113 = smul.addr %s112, 8
        %s114 = scalar_lea.vmem [#allocation7], %s113
        %s115 = smul.u32 %s21, 8
        loop: start=0, step=1, limit=8
        $region29: #{tpu_custom_call.1} parent=23 // loop_pre_header
          _
        $region30: #{tpu_custom_call.1} parent=23 // loop_header
          %s117 = sphi 0, %s121
          %p118 = scmp.ge.s32.totalorder %s117, 8
        $region31: #{tpu_custom_call.1} parent=23 // loop_header_branch
          %120 = sbr.rel (%p118) target = $region35
        $region32: #{tpu_custom_call.1} parent=23 // loop_body
          %s122 = sadd.s32 %s115, %s117
          %s123 = sld [smem:[#allocation3 + %s122]]
          %s124 = scalar_lea.vmem [#allocation4], %s123
          %v125 = vld [vmem:[%s124] sm:$0x1]
          %s126 = scalar_lea.vmem %s114, %s117 [#allocation7]
          %127 = vst [vmem:[%s126] sm:$0x1] %v125
        $region33: #{tpu_custom_call.1} parent=23 // loop_footer
          %s121 = sadd.s32 1, %s117
        $region34: #{tpu_custom_call.1} parent=23 // loop_footer_branch
          %116 = sbr.rel target = $region30
        $region35: #{tpu_custom_call.1} parent=23 // loop_exit
          _
        %v128 = vld [vmem:[%s114] sm:$0xff]
        %v129 = vmul.f32 %v128, 11.313708
        %130 = vst [vmem:[%s114] sm:$0xff] %v129
        %s131 = sand.u32 %s50, 1
        %s132 = scalar_lea.sflag [#allocation6], %s131
        %s133 = sand.u32 %s50, 1
        %s134 = smul.addr %s133, 8
        %s135 = scalar_lea.vmem [#allocation7], %s134
        // Predicated region
        $region36: #{tpu_custom_call.1} parent=23 // pred_check
          %p136 = pneg %p60
        $region37: #{tpu_custom_call.1} parent=23 // pred_check_branch
          %138 = sbr.rel (%p136) target = $region39
        $region38: #{tpu_custom_call.1} parent=23 // pred_region
          %s140 = ssub.s32 128, 128
          %141 = vsyncadd %s132, %s140
          %s142 = smul.addr %s21, 128
          %s143 = scalar_lea.hbm %s2, %s142
          %s145 = sshll.u32 %s135, 4
          %s146 = int_to_ptr.vmem [resolvable:$true] %s145
          %148 = dma.vmem_to_hbm [thread:$0]  %s146, 128, %s143, %s132
        $region39: #{tpu_custom_call.1} parent=23 // pred_fallthru
          _
      $region24: #{tpu_custom_call.1} parent=5 // pred_fallthru
        _
      %p149 = scmp.le.s32.totalorder 2, %s16
      // Predicated region
      $region40: #{tpu_custom_call.1} parent=5 // pred_check
        %p150 = pneg %p149
      $region41: #{tpu_custom_call.1} parent=5 // pred_check_branch
        %152 = sbr.rel (%p150) target = $region43
      $region42: #{tpu_custom_call.1} parent=5 // pred_region
        %s153 = ssub.s32 %s16, 2
        // Predicated region
        $region44: #{tpu_custom_call.1} parent=42 // pred_check
          %p154 = pneg %p66
        $region45: #{tpu_custom_call.1} parent=42 // pred_check_branch
          %156 = sbr.rel (%p154) target = $region47
        $region46: #{tpu_custom_call.1} parent=42 // pred_region
          %s157 = sand.u32 %s51, 1
          %s158 = scalar_lea.sflag [#allocation6], %s157
          %s159 = sand.u32 %s51, 1
          %s160 = smul.addr %s159, 8
          %s161 = scalar_lea.vmem [#allocation7], %s160
          %162 = dma.done %s158, 128
        $region47: #{tpu_custom_call.1} parent=42 // pred_fallthru
          _
      $region43: #{tpu_custom_call.1} parent=5 // pred_fallthru
        _
    $region6: #{tpu_custom_call.1} parent=1 // loop_footer
      %s20 = sadd.s32 1, %s16
    $region7: #{tpu_custom_call.1} parent=1 // loop_footer_branch
      %15 = sbr.rel target = $region3
    $region8: #{tpu_custom_call.1} parent=1 // loop_exit
      _
    %163 = vsyncpa [#allocation5], 1
    %s164 = scalar_lea.sflag [#allocation5], 1
    %165 = vsyncpa %s164, 1
    %166 = vsyncpa [#allocation6], 1
    %s167 = scalar_lea.sflag [#allocation6], 1
    %168 = vsyncpa %s167, 1

</llo_original>
